<compile_context>
chip_gen: v6e
topology: v6e:2x2x1
jax: 0.10.0
libtpu: 0.0.40
codegen_flags: <defaults>
</compile_context>

<pallas_src>
from functools import partial

import jax
import jax.numpy as jnp
import numpy as np
from jax.experimental import pallas as pl
from jax.experimental.pallas import tpu as pltpu

LANES = 128


def _vmem_limit(block_bytes):
    """Explicit VMEM budget: double-buffered working set + headroom, clipped."""
    need = 2 * int(block_bytes) + (4 << 20)
    return int(min(max(need, 8 << 20), 64 << 20))


# ----------------------------------------------------------------------------
# Kernel 1: expander-edge offsetting + attr broadcast + virtual-node embeddings.
# Grid: one step per graph (parallel).  `cum` is scalar-prefetched into SMEM.
# ----------------------------------------------------------------------------
def _expander_kernel(cum_ref,                       # SMEM, scalar-prefetched [G]
                     edges_ref, expw_ref, vnw_ref,  # inputs
                     eidx_ref, eattr_ref, virth_ref):
    g = pl.program_id(0)
    off = cum_ref[g]                                # cumulative node offset of graph g

    # expander_edge_index block for graph g: local ids + scalar offset (SMEM add).
    eidx_ref[...] = edges_ref[0] + off              # (2, E) int32

    # exp_edge_attr(zeros): one embedding row, pre-tiled to 128 lanes, broadcast
    # over the packed (E/pack, 128) slab -> full-width, lane-dense stores.
    eattr_ref[...] = jnp.broadcast_to(expw_ref[...], eattr_ref.shape)

    # virt_node_emb for graph g: the per-graph block is literally the [V, H]
    # embedding table (row v -> virtual node v of graph g); disjoint per step,
    # so it is megacore-safe.
    virth_ref[0] = vnw_ref[...]


# ----------------------------------------------------------------------------
# Kernel 2: virtual-edge index + attr construction.
# Grid: (node tiles, 2*V blocks), both parallel; every output block is disjoint.
# ----------------------------------------------------------------------------
def _virt_edge_kernel(G, N, tN,
                      batch_ref, vew_ref,
                      veidx_ref, vattr_ref):
    i = pl.program_id(0)                  # node tile
    b = pl.program_id(1)                  # combined block id: b = 2*virt_idx + dir
    v = b // 2
    d = b - 2 * v                         # 0: node->virt (in-emb), 1: virt->node (out-emb)

    node_ids = i * tN + jax.lax.broadcasted_iota(jnp.int32, (1, tN), 1)  # torch.arange tile
    tgt = batch_ref[...] + (N + v * G)    # batch.batch + (num_node + idx * num_graphs)

    is_in = d == 0
    top = jnp.where(is_in, node_ids, tgt)
    bot = jnp.where(is_in, tgt, node_ids)
    # One coalesced (2, tN) store per block instead of two (1, tN) stores.
    veidx_ref[...] = jnp.concatenate([top, bot], axis=0)

    # virt_edge_{in,out}_emb row (pre-tiled to 128 lanes, selected by the grid's
    # b axis via its own BlockSpec) broadcast over the packed (tN/pack, 128) slab.
    vattr_ref[...] = jnp.broadcast_to(vew_ref[0], vattr_ref.shape)


# ----------------------------------------------------------------------------
# Wrapper (forward pass)
# ----------------------------------------------------------------------------
def expander_edge_fixer_forward(expander_edges, batch_vec, num_nodes, params, *,
                                num_virt_node, node_tile=2048):
    """
    expander_edges : [G, 2, E] int32  per-graph local expander edges (rows = src, dst)
    batch_vec      : [N] int32        node -> graph id (graph-sorted)
    num_nodes      : [G] int32        nodes per graph
    params         : dict of embedding tables
    Returns a dict mirroring the attributes the PyTorch module sets on `batch`.
    """
    G, two, E = expander_edges.shape
    assert two == 2
    N = int(batch_vec.shape[0])
    D = int(params["exp_edge_attr"].shape[1])
    H = int(params["virt_node_emb"].shape[1])
    V = int(num_virt_node)
    GE = G * E

    assert LANES % D == 0, "dim_edge must divide 128 for the lane-dense packing"
    pack = LANES // D
    assert E % LANES == 0, "expander edges per graph must be a multiple of 128 (pad upstream)"
    assert N % LANES == 0, "total node count must be a multiple of 128 (pad upstream)"

    # Node tile: biggest multiple-of-128 divisor of N, capped at `node_tile`
    # (512-1024 packed attr rows per tile at D=32 -> near the HBM roofline sweet spot).
    tN = None
    t = min(node_tile, N)
    t -= t % LANES
    while t >= LANES:
        if N % t == 0:
            tN = t
            break
        t -= LANES
    assert tN is not None
    Tn = N // tN

    # ---- tiny staging (keeps every kernel store lane-dense) ------------------
    cum = jnp.concatenate([jnp.zeros((1,), jnp.int32),
                           jnp.cumsum(num_nodes.astype(jnp.int32))[:-1]])      # [G]
    exp_w_tiled = jnp.tile(params["exp_edge_attr"].astype(jnp.float32), (1, pack))  # [1, 128]
    in_w = params["virt_edge_in_emb"].astype(jnp.float32)
    out_w = params["virt_edge_out_emb"].astype(jnp.float32)
    # Row 2*v -> in_emb[v], row 2*v+1 -> out_emb[v]; pre-tiled to 128 lanes.
    ve_w = jnp.stack([jnp.tile(in_w, (1, pack)), jnp.tile(out_w, (1, pack))],
                     axis=1).reshape(2 * V, 1, LANES)                           # [2V, 1, 128]
    vn_w = params["virt_node_emb"].astype(jnp.float32)                          # [V, H]
    batch_row = batch_vec.reshape(1, N).astype(jnp.int32)
    edges = expander_edges.astype(jnp.int32)                                    # [G, 2, E]

    # ---- call 1: expander edges + virt node embeddings (grid over graphs) ----
    blk1 = (2 * E * 4 + LANES * 4 + V * H * 4            # input blocks
            + 2 * E * 4 + (E // pack) * LANES * 4 + V * H * 4)  # output blocks
    bytes1 = (G * 2 * E * 4 + G * 4 + LANES * 4 + V * H * 4
              + 2 * GE * 4 + (GE // pack) * LANES * 4 + G * V * H * 4)
    eidx, eattr_packed, virth_g = pl.pallas_call(
        _expander_kernel,
        out_shape=(
            jax.ShapeDtypeStruct((2, GE), jnp.int32),                   # expander_edge_index
            jax.ShapeDtypeStruct((GE // pack, LANES), jnp.float32),     # expander_edge_attr (packed)
            jax.ShapeDtypeStruct((G, V, H), jnp.float32),               # virt_h (graph-major)
        ),
        grid_spec=pltpu.PrefetchScalarGridSpec(
            num_scalar_prefetch=1,
            grid=(G,),
            in_specs=[
                pl.BlockSpec((1, 2, E), lambda g, cum_ref: (g, 0, 0)),
                pl.BlockSpec((1, LANES), lambda g, cum_ref: (0, 0)),
                pl.BlockSpec((V, H), lambda g, cum_ref: (0, 0)),
            ],
            out_specs=(
                pl.BlockSpec((2, E), lambda g, cum_ref: (0, g)),
                pl.BlockSpec((E // pack, LANES), lambda g, cum_ref: (g, 0)),
                pl.BlockSpec((1, V, H), lambda g, cum_ref: (g, 0, 0)),
            ),
        ),
        compiler_params=pltpu.CompilerParams(
            dimension_semantics=("parallel",),
            vmem_limit_bytes=_vmem_limit(blk1)),
        cost_estimate=pl.CostEstimate(flops=2 * GE, transcendentals=0,
                                      bytes_accessed=bytes1),
    )(cum, edges, exp_w_tiled, vn_w)

    # ---- call 2: virtual edges (grid over node tiles x 2V blocks) ------------
    blk2 = tN * 4 + LANES * 4 + 2 * tN * 4 + (tN // pack) * LANES * 4
    bytes2 = (N * 4 + 2 * V * LANES * 4
              + 2 * (2 * V * N) * 4 + (2 * V * N // pack) * LANES * 4)
    veidx, vattr_packed = pl.pallas_call(
        partial(_virt_edge_kernel, G, N, tN),
        out_shape=(
            jax.ShapeDtypeStruct((2, 2 * V * N), jnp.int32),                 # virt_edge_index
            jax.ShapeDtypeStruct((2 * V * N // pack, LANES), jnp.float32),   # virt_edge_attr (packed)
        ),
        grid_spec=pltpu.PrefetchScalarGridSpec(
            num_scalar_prefetch=0,
            grid=(Tn, 2 * V),
            in_specs=[
                pl.BlockSpec((1, tN), lambda i, b: (0, i)),
                pl.BlockSpec((1, 1, LANES), lambda i, b: (b, 0, 0)),
            ],
            out_specs=(
                pl.BlockSpec((2, tN), lambda i, b: (0, b * Tn + i)),
                pl.BlockSpec((tN // pack, LANES), lambda i, b: (b * Tn + i, 0)),
            ),
        ),
        compiler_params=pltpu.CompilerParams(
            dimension_semantics=("parallel", "parallel"),
            vmem_limit_bytes=_vmem_limit(blk2)),
        cost_estimate=pl.CostEstimate(flops=4 * V * N, transcendentals=0,
                                      bytes_accessed=bytes2),
    )(batch_row, ve_w)

    # Packed [rows/pack, 128] -> [rows, D] is a contiguous row-major view of the
    # same element order.
    # TODO(synk): if the downstream consumer can take the packed [rows/4, 128]
    # slab (or just the [V, D] tables + indices), skip these reshapes — on
    # (8,128)-tiled HBM a minor-dim change may otherwise cost a relayout pass.
    virt_h = jnp.swapaxes(virth_g, 0, 1).reshape(V * G, H)   # v-major = torch.cat order
    # NOTE: the local `edge_types` tensor in the PyTorch forward is never attached
    # to `batch`, so it is not produced here.
    return {
        "expander_edge_index": eidx,                              # [2, G*E]     int32
        "expander_edge_attr": eattr_packed.reshape(GE, D),        # [G*E, D]     f32
        "virt_h": virt_h,                                         # [V*G, H]     f32
        "virt_edge_index": veidx,                                 # [2, 2*V*N]   int32
        "virt_edge_attr": vattr_packed.reshape(2 * V * N, D),     # [2*V*N, D]   f32
    }


# ----------------------------------------------------------------------------
# Pure-JAX reference (mirrors the PyTorch forward semantics)
# ----------------------------------------------------------------------------
def _reference(expander_edges, batch_vec, num_nodes, params, *, num_virt_node):
    G, _, E = expander_edges.shape
    N = batch_vec.shape[0]
    D = params["exp_edge_attr"].shape[1]
    H = params["virt_node_emb"].shape[1]
    V = num_virt_node

    cum = jnp.concatenate([jnp.zeros((1,), jnp.int32),
                           jnp.cumsum(num_nodes.astype(jnp.int32))[:-1]])
    offs = jnp.repeat(cum, E)                                        # [G*E]
    src = expander_edges[:, 0, :].reshape(-1) + offs
    dst = expander_edges[:, 1, :].reshape(-1) + offs
    exp_eidx = jnp.stack([src, dst], axis=0)
    exp_eattr = jnp.broadcast_to(params["exp_edge_attr"], (G * E, D))

    virt_h = jnp.concatenate(
        [jnp.broadcast_to(params["virt_node_emb"][i:i + 1], (G, H)) for i in range(V)], axis=0)

    ar = jnp.arange(N, dtype=jnp.int32)
    idx_blocks, attr_blocks = [], []
    for i in range(V):
        tgt = batch_vec.astype(jnp.int32) + (N + i * G)
        idx_blocks.append(jnp.stack([ar, tgt], axis=0))
        idx_blocks.append(jnp.stack([tgt, ar], axis=0))
        attr_blocks.append(jnp.broadcast_to(params["virt_edge_in_emb"][i:i + 1], (N, D)))
        attr_blocks.append(jnp.broadcast_to(params["virt_edge_out_emb"][i:i + 1], (N, D)))
    virt_eidx = jnp.concatenate(idx_blocks, axis=1)
    virt_eattr = jnp.concatenate(attr_blocks, axis=0)

    return {
        "expander_edge_index": exp_eidx,
        "expander_edge_attr": exp_eattr,
        "virt_h": virt_h,
        "virt_edge_index": virt_eidx,
        "virt_edge_attr": virt_eattr,
    }


if __name__ == "__main__":
    # Small deterministic problem: 4 graphs x 64 nodes, 128 expander edges / graph,
    # 2 virtual nodes, hidden = edge dim = 32 (sizes chosen so lane/sublane tiling
    # constraints are met exactly without padding).
    num_graphs = 4
    nodes_per_graph = 64
    num_node = num_graphs * nodes_per_graph          # 256
    edges_per_graph = 128
    num_virt_node = 2
    dim_hidden = 32
    dim_edge = 32                                    # cfg.gt.dim_edge defaults to dim_hidden

    key = jax.random.PRNGKey(0)
    k1, k2, k3, k4, k5 = jax.random.split(key, 5)

    # Embedding tables (nn.Embedding ~ N(0, 1)), deterministic.
    params = {
        "exp_edge_attr": jax.random.normal(k1, (1, dim_edge), jnp.float32),
        "virt_node_emb": jax.random.normal(k2, (num_virt_node, dim_hidden), jnp.float32),
        "virt_edge_in_emb": jax.random.normal(k3, (num_virt_node, dim_edge), jnp.float32),
        "virt_edge_out_emb": jax.random.normal(k4, (num_virt_node, dim_edge), jnp.float32),
    }

    # Per-graph expander edges staged [G, 2, E] with local node ids (src/dst rows).
    expander_edges = jax.random.randint(
        k5, (num_graphs, 2, edges_per_graph), 0, nodes_per_graph, dtype=jnp.int32)
    batch_vec = jnp.repeat(jnp.arange(num_graphs, dtype=jnp.int32), nodes_per_graph)
    num_nodes = jnp.full((num_graphs,), nodes_per_graph, dtype=jnp.int32)

    out = expander_edge_fixer_forward(
        expander_edges, batch_vec, num_nodes, params, num_virt_node=num_virt_node)
    jax.block_until_ready(out)

    ref = _reference(
        expander_edges, batch_vec, num_nodes, params, num_virt_node=num_virt_node)

    assert np.array_equal(np.asarray(out["expander_edge_index"]),
                          np.asarray(ref["expander_edge_index"]))
    assert np.array_equal(np.asarray(out["virt_edge_index"]),
                          np.asarray(ref["virt_edge_index"]))
    np.testing.assert_allclose(np.asarray(out["expander_edge_attr"]),
                               np.asarray(ref["expander_edge_attr"]), rtol=1e-6)
    np.testing.assert_allclose(np.asarray(out["virt_h"]),
                               np.asarray(ref["virt_h"]), rtol=1e-6)
    np.testing.assert_allclose(np.asarray(out["virt_edge_attr"]),
                               np.asarray(ref["virt_edge_attr"]), rtol=1e-6)

    print("KERNEL_OK")
</pallas_src>

<mosaic_0001>
module attributes {stable_mosaic.version = 11 : i64} {
  func.func @_expander_kernel(%arg0: i32, %arg1: memref<4xi32, #tpu.memory_space<smem>>, %arg2: memref<1x2x128xi32, #tpu.memory_space<vmem>>, %arg3: memref<1x128xf32, #tpu.memory_space<vmem>>, %arg4: memref<2x32xf32, #tpu.memory_space<vmem>>, %arg5: memref<2x128xi32, #tpu.memory_space<vmem>>, %arg6: memref<32x128xf32, #tpu.memory_space<vmem>>, %arg7: memref<1x2x32xf32, #tpu.memory_space<vmem>>) attributes {dimension_semantics = [#tpu.dimension_semantics<parallel>], iteration_bounds = array<i64: 4>, scalar_prefetch = 1 : i64, scratch_operands = 0 : i64, tpu.core_type = #tpu.core_type<tc>, window_params = [{transform_indices = @transform_0, window_bounds = array<i64: 1, 2, 128>}, {pipeline_mode = #tpu.pipeline_mode<synchronous>, transform_indices = @transform_1, window_bounds = array<i64: 1, 128>}, {pipeline_mode = #tpu.pipeline_mode<synchronous>, transform_indices = @transform_2, window_bounds = array<i64: 2, 32>}, {transform_indices = @transform_3, window_bounds = array<i64: 2, 128>}, {transform_indices = @transform_4, window_bounds = array<i64: 32, 128>}, {transform_indices = @transform_5, window_bounds = array<i64: 1, 2, 32>}]} {
    %0 = arith.index_cast %arg0 : i32 to index
    %1 = memref.load %arg1[%0] : memref<4xi32, #tpu.memory_space<smem>>
    %c0 = arith.constant 0 : index
    %c0_0 = arith.constant 0 : index
    %c0_1 = arith.constant 0 : index
    %2 = vector.load %arg2[%c0, %c0_0, %c0_1] : memref<1x2x128xi32, #tpu.memory_space<vmem>>, vector<1x2x128xi32>
    %3 = vector.shape_cast %2 : vector<1x2x128xi32> to vector<2x128xi32>
    %4 = vector.broadcast %1 : i32 to vector<2x128xi32>
    %5 = arith.addi %3, %4 : vector<2x128xi32>
    %c0_2 = arith.constant 0 : index
    %c0_3 = arith.constant 0 : index
    %6 = vector.load %arg5[%c0_2, %c0_3] : memref<2x128xi32, #tpu.memory_space<vmem>>, vector<2x128xi32>
    tpu.vector_store %arg5[%c0_2, %c0_3], %5 {strides = array<i32>} : memref<2x128xi32, #tpu.memory_space<vmem>>, vector<2x128xi32>,
    %c0_4 = arith.constant 0 : index
    %c0_5 = arith.constant 0 : index
    %7 = vector.load %arg3[%c0_4, %c0_5] : memref<1x128xf32, #tpu.memory_space<vmem>>, vector<1x128xf32>
    %8 = vector.shape_cast %7 : vector<1x128xf32> to vector<1x128xf32>
    %9 = vector.broadcast %8 : vector<1x128xf32> to vector<32x128xf32>
    %c0_6 = arith.constant 0 : index
    %c0_7 = arith.constant 0 : index
    %10 = vector.load %arg6[%c0_6, %c0_7] : memref<32x128xf32, #tpu.memory_space<vmem>>, vector<32x128xf32>
    tpu.vector_store %arg6[%c0_6, %c0_7], %9 {strides = array<i32>} : memref<32x128xf32, #tpu.memory_space<vmem>>, vector<32x128xf32>,
    %c0_8 = arith.constant 0 : index
    %c0_9 = arith.constant 0 : index
    %11 = vector.load %arg4[%c0_8, %c0_9] : memref<2x32xf32, #tpu.memory_space<vmem>>, vector<2x32xf32>
    %c0_10 = arith.constant 0 : index
    %c0_11 = arith.constant 0 : index
    %c0_12 = arith.constant 0 : index
    %12 = vector.load %arg7[%c0_10, %c0_11, %c0_12] : memref<1x2x32xf32, #tpu.memory_space<vmem>>, vector<1x2x32xf32>
    %13 = vector.shape_cast %12 : vector<1x2x32xf32> to vector<2x32xf32>
    %14 = vector.shape_cast %11 : vector<2x32xf32> to vector<1x2x32xf32>
    tpu.vector_store %arg7[%c0_10, %c0_11, %c0_12], %14 {strides = array<i32>} : memref<1x2x32xf32, #tpu.memory_space<vmem>>, vector<1x2x32xf32>,
    return
  }
  func.func @transform_0(%arg0: i32, %arg1: memref<4xi32, #tpu.memory_space<smem>>) -> (i32, i32, i32) {
    %c0_i32 = arith.constant 0 : i32
    %c0_i32_0 = arith.constant 0 : i32
    %c0_i32_1 = arith.constant 0 : i32
    return %arg0, %c0_i32, %c0_i32_0 : i32, i32, i32
  }
  func.func @transform_1(%arg0: i32, %arg1: memref<4xi32, #tpu.memory_space<smem>>) -> (i32, i32) {
    %c0_i32 = arith.constant 0 : i32
    %c0_i32_0 = arith.constant 0 : i32
    %c0_i32_1 = arith.constant 0 : i32
    return %c0_i32, %c0_i32_0 : i32, i32
  }
  func.func @transform_2(%arg0: i32, %arg1: memref<4xi32, #tpu.memory_space<smem>>) -> (i32, i32) {
    %c0_i32 = arith.constant 0 : i32
    %c0_i32_0 = arith.constant 0 : i32
    %c0_i32_1 = arith.constant 0 : i32
    return %c0_i32, %c0_i32_0 : i32, i32
  }
  func.func @transform_3(%arg0: i32, %arg1: memref<4xi32, #tpu.memory_space<smem>>) -> (i32, i32) {
    %c0_i32 = arith.constant 0 : i32
    %c0_i32_0 = arith.constant 0 : i32
    return %c0_i32, %arg0 : i32, i32
  }
  func.func @transform_4(%arg0: i32, %arg1: memref<4xi32, #tpu.memory_space<smem>>) -> (i32, i32) {
    %c0_i32 = arith.constant 0 : i32
    %c0_i32_0 = arith.constant 0 : i32
    return %arg0, %c0_i32 : i32, i32
  }
  func.func @transform_5(%arg0: i32, %arg1: memref<4xi32, #tpu.memory_space<smem>>) -> (i32, i32, i32) {
    %c0_i32 = arith.constant 0 : i32
    %c0_i32_0 = arith.constant 0 : i32
    %c0_i32_1 = arith.constant 0 : i32
    return %arg0, %c0_i32, %c0_i32_0 : i32, i32, i32
  }
}

</mosaic_0001>

<llo_original>
// kernel: tpu_custom_call.1
$region0: #{tpu_custom_call.1}
  #allocation0 [shape = 'u32[]', space=smem, size = 0x4, offset = 0x4, fixed_abs, tag = 'smem constant byte address 0x4 - core index']
  #allocation1 [shape = 'u32[144,128]{1,0:T(1,128)}', space=vmem, size = 0x12000, scoped, tag = 'internal scratch']
  #allocation2 [shape = 's32[1]{0}', space=sflag, size = 0x4, scoped, tag = 'scoped memory for tpu_custom_call.1']
  #allocation3 [shape = 'u8[512]{0}', space=smem, size = 0x200, scoped, tag = 'prefetched SMEM operand 0']
  %s0 = inlined_call_operand.hbm [shape: s32[4], index: 0, kind: input, shape index: {}]
  %s1 = inlined_call_operand.hbm [shape: s32[4,2,128], index: 1, kind: input, shape index: {}]
  %s2 = inlined_call_operand.vmem [shape: f32[1,128], index: 2, kind: input, shape index: {}]
  %s3 = inlined_call_operand.vmem [shape: f32[2,32], index: 3, kind: input, shape index: {}]
  %s4 = inlined_call_operand.hbm [shape: s32[2,512], index: 4, kind: output, shape index: {0}]
  %s5 = inlined_call_operand.hbm [shape: f32[128,128], index: 5, kind: output, shape index: {1}]
  %s6 = inlined_call_operand.hbm [shape: f32[4,2,32], index: 6, kind: output, shape index: {2}]
  %7 = xla_tuple %s4, %s5, %s6
  %s8 = sld [smem:[#allocation0]]
  $region65: #{tpu_custom_call.1} parent=0
    _
  %s10 = ssub.s32 1, %s8
  %s11 = scalar_select 0, %s10, %s8
  %13 = dma.hbm_to_smem %s0, 16, [#allocation3], [#allocation2]
  %14 = dma.done [#allocation2], 16
  %15 = sfence
  $region1: #{tpu_custom_call.1} parent=0
    #allocation4 [shape = 'u8[2048]{0}', space=vmem, size = 0x800, scoped, tag = 'input window, operand 1']
    #allocation5 [shape = 's32[2]{0}', space=sflag, size = 0x8, scoped, tag = 'scoped memory for tpu_custom_call.1']
    #allocation6 [shape = 's32[2]{0}', space=sflag, size = 0x8, scoped, tag = 'scoped memory for tpu_custom_call.1']
    #allocation7 [shape = 'u8[2048]{0}', space=vmem, size = 0x800, scoped, tag = 'output window, operand 0']
    #allocation8 [shape = 'u8[32768]{0}', space=vmem, size = 0x8000, scoped, tag = 'output window, operand 1']
    #allocation9 [shape = 's32[2]{0}', space=sflag, size = 0x8, scoped, tag = 'scoped memory for tpu_custom_call.1']
    #allocation10 [shape = 'u8[2048]{0}', space=vmem, size = 0x800, scoped, tag = 'output window, operand 2']
    %16 = vsyncpa [#allocation5], 0
    %s17 = scalar_lea.sflag [#allocation5], 1
    %18 = vsyncpa %s17, 0
    %19 = vsyncpa [#allocation6], 0
    %s20 = scalar_lea.sflag [#allocation6], 1
    %21 = vsyncpa %s20, 0
    %22 = vsyncpa [#allocation9], 0
    %s23 = scalar_lea.sflag [#allocation9], 1
    %24 = vsyncpa %s23, 0
    loop: start=0, step=1, limit=6
    $region2: #{tpu_custom_call.1} parent=1 // loop_pre_header
      _
    $region3: #{tpu_custom_call.1} parent=1 // loop_header
      %s26 = sphi 0, %s30
      %p27 = scmp.ge.s32.totalorder %s26, 6
      %s36 = sphi 0, %s38
      %s39 = sphi 0, %s36
      %s40 = sphi 0, %s39
      %s56 = sphi 0, %s40
      %s60 = sphi 0, %s60
      %s62 = sphi 0, %s60
      %s63 = sphi 0, %s62
      %s77 = sphi 0, %s63
      %s81 = sphi 0, %s81
      %s83 = sphi 0, %s81
      %s84 = sphi 0, %s83
      %s98 = sphi 0, %s84
      %s104 = sphi 0, %s106
      %s107 = sphi 0, %s104
      %s108 = sphi 0, %s107
      %s124 = sphi 0, %s108
      %s130 = sphi 0, %s132
      %s133 = sphi 0, %s130
      %s134 = sphi 0, %s133
      %s150 = sphi 0, %s134
      %s156 = sphi 0, %s158
      %s159 = sphi 0, %s156
      %s160 = sphi 0, %s159
      %s176 = sphi 0, %s160
    $region4: #{tpu_custom_call.1} parent=1 // loop_header_branch
      %29 = sbr.rel (%p27) target = $region8
    $region5: #{tpu_custom_call.1} parent=1 // loop_body
      %s31 = ssub.s32 %s26, 1
      %s32 = ssub.s32 %s26, 2
      %s33 = sadd.s32 %s26, 1
      %s34 = ssub.s32 %s26, %s33
      %p35 = scmp.eq.s32.totalorder %s34, 0
      %s37 = sadd.s32 %s36, 1
      %s38 = scalar_select %p35, %s36, %s37
      %p41 = pneg %p35
      %p42 = scmp.eq.s32.totalorder %s26, 3
      %p43 = por %p41, %p42
      %p44 = scmp.ne.s32.totalorder %s36, %s39
      %p45 = scmp.eq.s32.totalorder %s26, 0
      %p46 = por %p44, %p45
      %p47 = scmp.ne.s32.totalorder %s36, %s39
      %p48 = scmp.eq.s32.totalorder %s31, 3
      %p49 = por %p47, %p48
      %p50 = scmp.ne.s32.totalorder %s39, %s40
      %p51 = scmp.eq.s32.totalorder %s31, 0
      %p52 = por %p50, %p51
      %p53 = scmp.ne.s32.totalorder %s39, %s40
      %p54 = scmp.eq.s32.totalorder %s32, 3
      %p55 = por %p53, %p54
      %p57 = scmp.ne.s32.totalorder %s40, %s56
      %p58 = scmp.eq.s32.totalorder %s32, 0
      %p59 = por %p57, %p58
      %s61 = sadd.s32 %s60, 1
      %p64 = scmp.eq.s32.totalorder %s26, 3
      %p65 = scmp.ne.s32.totalorder %s60, %s62
      %p66 = scmp.eq.s32.totalorder %s26, 0
      %p67 = por %p65, %p66
      %p68 = scmp.ne.s32.totalorder %s60, %s62
      %p69 = scmp.eq.s32.totalorder %s31, 3
      %p70 = por %p68, %p69
      %p71 = scmp.ne.s32.totalorder %s62, %s63
      %p72 = scmp.eq.s32.totalorder %s31, 0
      %p73 = por %p71, %p72
      %p74 = scmp.ne.s32.totalorder %s62, %s63
      %p75 = scmp.eq.s32.totalorder %s32, 3
      %p76 = por %p74, %p75
      %p78 = scmp.ne.s32.totalorder %s63, %s77
      %p79 = scmp.eq.s32.totalorder %s32, 0
      %p80 = por %p78, %p79
      %s82 = sadd.s32 %s81, 1
      %p85 = scmp.eq.s32.totalorder %s26, 3
      %p86 = scmp.ne.s32.totalorder %s81, %s83
      %p87 = scmp.eq.s32.totalorder %s26, 0
      %p88 = por %p86, %p87
      %p89 = scmp.ne.s32.totalorder %s81, %s83
      %p90 = scmp.eq.s32.totalorder %s31, 3
      %p91 = por %p89, %p90
      %p92 = scmp.ne.s32.totalorder %s83, %s84
      %p93 = scmp.eq.s32.totalorder %s31, 0
      %p94 = por %p92, %p93
      %p95 = scmp.ne.s32.totalorder %s83, %s84
      %p96 = scmp.eq.s32.totalorder %s32, 3
      %p97 = por %p95, %p96
      %p99 = scmp.ne.s32.totalorder %s84, %s98
      %p100 = scmp.eq.s32.totalorder %s32, 0
      %p101 = por %p99, %p100
      %s102 = ssub.s32 %s26, %s33
      %p103 = scmp.eq.s32.totalorder %s102, 0
      %s105 = sadd.s32 %s104, 1
      %s106 = scalar_select %p103, %s104, %s105
      %p109 = pneg %p103
      %p110 = scmp.eq.s32.totalorder %s26, 3
      %p111 = por %p109, %p110
      %p112 = scmp.ne.s32.totalorder %s104, %s107
      %p113 = scmp.eq.s32.totalorder %s26, 0
      %p114 = por %p112, %p113
      %p115 = scmp.ne.s32.totalorder %s104, %s107
      %p116 = scmp.eq.s32.totalorder %s31, 3
      %p117 = por %p115, %p116
      %p118 = scmp.ne.s32.totalorder %s107, %s108
      %p119 = scmp.eq.s32.totalorder %s31, 0
      %p120 = por %p118, %p119
      %p121 = scmp.ne.s32.totalorder %s107, %s108
      %p122 = scmp.eq.s32.totalorder %s32, 3
      %p123 = por %p121, %p122
      %p125 = scmp.ne.s32.totalorder %s108, %s124
      %p126 = scmp.eq.s32.totalorder %s32, 0
      %p127 = por %p125, %p126
      %s128 = ssub.s32 %s26, %s33
      %p129 = scmp.eq.s32.totalorder %s128, 0
      %s131 = sadd.s32 %s130, 1
      %s132 = scalar_select %p129, %s130, %s131
      %p135 = pneg %p129
      %p136 = scmp.eq.s32.totalorder %s26, 3
      %p137 = por %p135, %p136
      %p138 = scmp.ne.s32.totalorder %s130, %s133
      %p139 = scmp.eq.s32.totalorder %s26, 0
      %p140 = por %p138, %p139
      %p141 = scmp.ne.s32.totalorder %s130, %s133
      %p142 = scmp.eq.s32.totalorder %s31, 3
      %p143 = por %p141, %p142
      %p144 = scmp.ne.s32.totalorder %s133, %s134
      %p145 = scmp.eq.s32.totalorder %s31, 0
      %p146 = por %p144, %p145
      %p147 = scmp.ne.s32.totalorder %s133, %s134
      %p148 = scmp.eq.s32.totalorder %s32, 3
      %p149 = por %p147, %p148
      %p151 = scmp.ne.s32.totalorder %s134, %s150
      %p152 = scmp.eq.s32.totalorder %s32, 0
      %p153 = por %p151, %p152
      %s154 = ssub.s32 %s26, %s33
      %p155 = scmp.eq.s32.totalorder %s154, 0
      %s157 = sadd.s32 %s156, 1
      %s158 = scalar_select %p155, %s156, %s157
      %p161 = pneg %p155
      %p162 = scmp.eq.s32.totalorder %s26, 3
      %p163 = por %p161, %p162
      %p164 = scmp.ne.s32.totalorder %s156, %s159
      %p165 = scmp.eq.s32.totalorder %s26, 0
      %p166 = por %p164, %p165
      %p167 = scmp.ne.s32.totalorder %s156, %s159
      %p168 = scmp.eq.s32.totalorder %s31, 3
      %p169 = por %p167, %p168
      %p170 = scmp.ne.s32.totalorder %s159, %s160
      %p171 = scmp.eq.s32.totalorder %s31, 0
      %p172 = por %p170, %p171
      %p173 = scmp.ne.s32.totalorder %s159, %s160
      %p174 = scmp.eq.s32.totalorder %s32, 3
      %p175 = por %p173, %p174
      %p177 = scmp.ne.s32.totalorder %s160, %s176
      %p178 = scmp.eq.s32.totalorder %s32, 0
      %p179 = por %p177, %p178
      %p180 = scmp.le.s32.totalorder 1, %s26
      %p181 = scmp.lt.s32.totalorder %s26, 5
      %p182 = pnand %p180, %p181
      %p183 = pneg %p182
      // Predicated region
      $region9: #{tpu_custom_call.1} parent=5 // pred_check
        _
      $region10: #{tpu_custom_call.1} parent=5 // pred_check_branch
        %185 = sbr.rel (%p182) target = $region12
      $region11: #{tpu_custom_call.1} parent=5 // pred_region
        %s186 = ssub.s32 %s26, 1
        // Predicated region
        $region13: #{tpu_custom_call.1} parent=11 // pred_check
          %p187 = pneg %p73
        $region14: #{tpu_custom_call.1} parent=11 // pred_check_branch
          %189 = sbr.rel (%p187) target = $region16
        $region15: #{tpu_custom_call.1} parent=11 // pred_region
          _
        $region16: #{tpu_custom_call.1} parent=11 // pred_fallthru
          _
        // Predicated region
        $region17: #{tpu_custom_call.1} parent=11 // pred_check
          %p190 = pneg %p94
        $region18: #{tpu_custom_call.1} parent=11 // pred_check_branch
          %192 = sbr.rel (%p190) target = $region20
        $region19: #{tpu_custom_call.1} parent=11 // pred_region
          _
        $region20: #{tpu_custom_call.1} parent=11 // pred_fallthru
          _
      $region12: #{tpu_custom_call.1} parent=5 // pred_fallthru
        _
      %p193 = scmp.lt.s32.totalorder %s26, 4
      // Predicated region
      $region21: #{tpu_custom_call.1} parent=5 // pred_check
        %p194 = pneg %p193
      $region22: #{tpu_custom_call.1} parent=5 // pred_check_branch
        %196 = sbr.rel (%p194) target = $region24
      $region23: #{tpu_custom_call.1} parent=5 // pred_region
        // Predicated region
        $region25: #{tpu_custom_call.1} parent=23 // pred_check
          %p197 = pneg %p46
        $region26: #{tpu_custom_call.1} parent=23 // pred_check_branch
          %199 = sbr.rel (%p197) target = $region28
        $region27: #{tpu_custom_call.1} parent=23 // pred_region
          %s200 = sand.u32 %s36, 1
          %s201 = scalar_lea.sflag [#allocation5], %s200
          %s202 = sand.u32 %s36, 1
          %s203 = smul.addr %s202, 2
          %s204 = scalar_lea.vmem [#allocation4], %s203
          %s206 = ssub.s32 32, 32
          %207 = vsyncadd %s201, %s206
          %s208 = smul.addr %s26, 32
          %s209 = scalar_lea.hbm %s1, %s208
          %s211 = sshll.u32 %s204, 4
          %s212 = int_to_ptr.vmem [resolvable:$true] %s211
          %214 = dma.hbm_to_vmem [thread:$0]  %s209, 32, %s212, %s201
        $region28: #{tpu_custom_call.1} parent=23 // pred_fallthru
          _
      $region24: #{tpu_custom_call.1} parent=5 // pred_fallthru
        _
      %p215 = scmp.le.s32.totalorder 1, %s26
      %p216 = scmp.lt.s32.totalorder %s26, 5
      %p217 = pnand %p215, %p216
      %p218 = pneg %p217
      // Predicated region
      $region29: #{tpu_custom_call.1} parent=5 // pred_check
        _
      $region30: #{tpu_custom_call.1} parent=5 // pred_check_branch
        %220 = sbr.rel (%p217) target = $region32
      $region31: #{tpu_custom_call.1} parent=5 // pred_region
        %s221 = ssub.s32 %s26, 1
        %s222 = sand.u32 %s39, 1
        %s223 = scalar_lea.sflag [#allocation5], %s222
        %s224 = sand.u32 %s39, 1
        %s225 = smul.addr %s224, 2
        %s226 = scalar_lea.vmem [#allocation4], %s225
        // Predicated region
        $region33: #{tpu_custom_call.1} parent=31 // pred_check
          %p227 = pneg %p52
        $region34: #{tpu_custom_call.1} parent=31 // pred_check_branch
          %229 = sbr.rel (%p227) target = $region36
        $region35: #{tpu_custom_call.1} parent=31 // pred_region
          %230 = dma.done %s223, 32
        $region36: #{tpu_custom_call.1} parent=31 // pred_fallthru
          _
        %s231 = sand.u32 %s39, 1
        %s232 = scalar_lea.sflag [#allocation5], %s231
        %s233 = sand.u32 %s39, 1
        %s234 = smul.addr %s233, 2
        %s235 = scalar_lea.vmem [#allocation4], %s234
        %p236 = pneg %p52
        %p237 = pneg %p49
        %p238 = pneg %p73
        %p239 = pneg %p70
        %p240 = pneg %p94
        %p241 = pneg %p91
        %p242 = pneg %p120
        %p243 = pneg %p117
        %s244 = sand.u32 %s107, 1
        %s245 = scalar_lea.sflag [#allocation6], %s244
        %s246 = sand.u32 %s107, 1
        %s247 = smul.addr %s246, 2
        %s248 = scalar_lea.vmem [#allocation7], %s247
        %p249 = pneg %p146
        %p250 = pneg %p143
        %s251 = sand.u32 %s31, 1
        %s252 = scalar_lea.sflag [#allocation9], %s251
        %s253 = sand.u32 %s133, 1
        %s254 = smul.addr %s253, 32
        %s255 = scalar_lea.vmem [#allocation8], %s254
        %p256 = pneg %p172
        %p257 = pneg %p169
        %s258 = sand.u32 %s31, 1
        %s259 = scalar_lea.sflag [#allocation9], %s258
        %s260 = sand.u32 %s159, 1
        %s261 = smul.addr %s260, 2
        %s262 = scalar_lea.vmem [#allocation10], %s261
        %s263 = smul.u32 4, %s31
        %s264 = sld [smem:[#allocation3 + %s31]]
        %v265 = vld [vmem:[%s226] sm:$0x3]
        %v266 = vstv %s264
        %v267 = vadd.s32 %v265, %v266
        %268 = vst [vmem:[%s248] sm:$0x3] %v267
        %v269 = vld [vmem:[%s2] sm:$0x1]
        %v271 = vlaneseq
        %v272 = vshrl.u32 %v271, 7
        %v273 = vsub.s32 0, %v272
        %v274 = vrot.slane %v269, %v273
        %276 = vst [vmem:[%s255] sm:$0xff] %v274
        %277 = vst [vmem:[%s255 + $0x8] sm:$0xff] %v274
        %278 = vst [vmem:[%s255 + $0x10] sm:$0xff] %v274
        %279 = vst [vmem:[%s255 + $0x18] sm:$0xff] %v274
        %v280 = vld [vmem:[%s3] sm:$0x3]
        %vm281 = vcmask 254976
        %282 = vst.msk [vmem:[%s262] sm:$0x3] %vm281, %v280
        %s283 = sand.u32 %s107, 1
        %s284 = scalar_lea.sflag [#allocation6], %s283
        %s285 = sand.u32 %s107, 1
        %s286 = smul.addr %s285, 2
        %s287 = scalar_lea.vmem [#allocation7], %s286
        %s288 = sand.u32 %s31, 1
        %s289 = scalar_lea.sflag [#allocation9], %s288
        %s290 = sand.u32 %s133, 1
        %s291 = smul.addr %s290, 32
        %s292 = scalar_lea.vmem [#allocation8], %s291
        %s293 = sand.u32 %s31, 1
        %s294 = scalar_lea.sflag [#allocation9], %s293
        %s295 = sand.u32 %s159, 1
        %s296 = smul.addr %s295, 2
        %s297 = scalar_lea.vmem [#allocation10], %s296
        // Predicated region
        $region37: #{tpu_custom_call.1} parent=31 // pred_check
          %p298 = pneg %p117
        $region38: #{tpu_custom_call.1} parent=31 // pred_check_branch
          %300 = sbr.rel (%p298) target = $region40
        $region39: #{tpu_custom_call.1} parent=31 // pred_region
          %s302 = ssub.s32 32, 32
          %303 = vsyncadd %s284, %s302
          %s304 = smul.addr %s31, 32
          %s305 = scalar_lea.hbm %s4, %s304
          %s307 = sshll.u32 %s287, 4
          %s308 = int_to_ptr.vmem [resolvable:$true] %s307
          %310 = dma.vmem_to_hbm [thread:$0]  %s308, 32, %s305, %s284
        $region40: #{tpu_custom_call.1} parent=31 // pred_fallthru
          _
        // Predicated region
        $region41: #{tpu_custom_call.1} parent=31 // pred_check
          %p311 = pneg %p143
        $region42: #{tpu_custom_call.1} parent=31 // pred_check_branch
          %313 = sbr.rel (%p311) target = $region44
        $region43: #{tpu_custom_call.1} parent=31 // pred_region
          %s314 = smul.u32 4, %s31
          %s316 = ssub.s32 512, 512
          %317 = vsyncadd %s289, %s316
          %s318 = smul.addr %s314, 128
          %s319 = scalar_lea.hbm %s5, %s318
          %s320 = sshll.u32 %s292, 4
          %s321 = int_to_ptr.vmem [resolvable:$true] %s320
          %326 = dma.vmem_to_hbm [thread:$0]  %s321, 512, %s319, %s289, 128, 128, 8
        $region44: #{tpu_custom_call.1} parent=31 // pred_fallthru
          _
        // Predicated region
        $region45: #{tpu_custom_call.1} parent=31 // pred_check
          %p327 = pneg %p169
        $region46: #{tpu_custom_call.1} parent=31 // pred_check_branch
          %329 = sbr.rel (%p327) target = $region48
        $region47: #{tpu_custom_call.1} parent=31 // pred_region
          %s331 = ssub.s32 32, 32
          %332 = vsyncadd %s294, %s331
          %s333 = smul.addr %s31, 32
          %s334 = scalar_lea.hbm %s6, %s333
          %s336 = sshll.u32 %s297, 4
          %s337 = int_to_ptr.vmem [resolvable:$true] %s336
          %339 = dma.vmem_to_hbm [thread:$0]  %s337, 32, %s334, %s294
        $region48: #{tpu_custom_call.1} parent=31 // pred_fallthru
          _
      $region32: #{tpu_custom_call.1} parent=5 // pred_fallthru
        _
      %p340 = scmp.le.s32.totalorder 2, %s26
      // Predicated region
      $region49: #{tpu_custom_call.1} parent=5 // pred_check
        %p341 = pneg %p340
      $region50: #{tpu_custom_call.1} parent=5 // pred_check_branch
        %343 = sbr.rel (%p341) target = $region52
      $region51: #{tpu_custom_call.1} parent=5 // pred_region
        %s344 = ssub.s32 %s26, 2
        // Predicated region
        $region53: #{tpu_custom_call.1} parent=51 // pred_check
          %p345 = pneg %p123
        $region54: #{tpu_custom_call.1} parent=51 // pred_check_branch
          %347 = sbr.rel (%p345) target = $region56
        $region55: #{tpu_custom_call.1} parent=51 // pred_region
          %s348 = sand.u32 %s108, 1
          %s349 = scalar_lea.sflag [#allocation6], %s348
          %s350 = sand.u32 %s108, 1
          %s351 = smul.addr %s350, 2
          %s352 = scalar_lea.vmem [#allocation7], %s351
          %353 = dma.done %s349, 32
        $region56: #{tpu_custom_call.1} parent=51 // pred_fallthru
          _
        // Predicated region
        $region57: #{tpu_custom_call.1} parent=51 // pred_check
          %p354 = pneg %p149
        $region58: #{tpu_custom_call.1} parent=51 // pred_check_branch
          %356 = sbr.rel (%p354) target = $region60
        $region59: #{tpu_custom_call.1} parent=51 // pred_region
          %s357 = sand.u32 %s32, 1
          %s358 = scalar_lea.sflag [#allocation9], %s357
          %s359 = sand.u32 %s134, 1
          %s360 = smul.addr %s359, 32
          %s361 = scalar_lea.vmem [#allocation8], %s360
          %362 = dma.done %s358, 512
        $region60: #{tpu_custom_call.1} parent=51 // pred_fallthru
          _
        // Predicated region
        $region61: #{tpu_custom_call.1} parent=51 // pred_check
          %p363 = pneg %p175
        $region62: #{tpu_custom_call.1} parent=51 // pred_check_branch
          %365 = sbr.rel (%p363) target = $region64
        $region63: #{tpu_custom_call.1} parent=51 // pred_region
          %s366 = sand.u32 %s32, 1
          %s367 = scalar_lea.sflag [#allocation9], %s366
          %s368 = sand.u32 %s160, 1
          %s369 = smul.addr %s368, 2
          %s370 = scalar_lea.vmem [#allocation10], %s369
          %371 = dma.done %s367, 32
        $region64: #{tpu_custom_call.1} parent=51 // pred_fallthru
          _
      $region52: #{tpu_custom_call.1} parent=5 // pred_fallthru
        _
    $region6: #{tpu_custom_call.1} parent=1 // loop_footer
      %s30 = sadd.s32 1, %s26
    $region7: #{tpu_custom_call.1} parent=1 // loop_footer_branch
      %25 = sbr.rel target = $region3
    $region8: #{tpu_custom_call.1} parent=1 // loop_exit
      _
    %372 = vsyncpa [#allocation5], 1
    %s373 = scalar_lea.sflag [#allocation5], 1
    %374 = vsyncpa %s373, 1
    %375 = vsyncpa [#allocation6], 1
    %s376 = scalar_lea.sflag [#allocation6], 1
    %377 = vsyncpa %s376, 1
    %378 = vsyncpa [#allocation9], 1
    %s379 = scalar_lea.sflag [#allocation9], 1
    %380 = vsyncpa %s379, 1

</llo_original>
